<compile_context>
chip_gen: v7x
topology: tpu7x:2x2x1
jax: 0.10.0
libtpu: 0.0.40
codegen_flags: <defaults>
</compile_context>

<pallas_src>
import jax
import jax.numpy as jnp
from jax.experimental import pallas as pl
from jax.experimental.pallas import tpu as pltpu


def _frozen_bn_kernel(x_ref, scale_ref, bias_ref, o_ref):
    # scale/bias are (block_rows, 1) f32; broadcast over the spatial (lane) axis.
    x = x_ref[...].astype(jnp.float32)
    o_ref[...] = (x * scale_ref[...] + bias_ref[...]).astype(o_ref.dtype)


def _round_up(x, m):
    return ((x + m - 1) // m) * m


def frozen_batch_norm_2d(x, weight, bias, running_mean, running_var, eps=1e-5,
                         target_block_bytes=8 * 1024 * 1024,
                         lane_tile_cap=8192):
    """FrozenBatchNorm2d forward. x: (N, C, H, W); params: (C,)."""
    N, C, H, W = x.shape
    NC, HW = N * C, H * W
    itemsize = jnp.dtype(x.dtype).itemsize
    # VMEM footprint per block is governed by the f32 intermediates when the
    # input is sub-32-bit, so size tiles against max(itemsize, 4).
    itemsize_eff = max(itemsize, 4)

    # Sublane packing of the x blocks: f32 -> 8, bf16/f16 -> 16, int8/fp8 -> 32.
    row_align = {4: 8, 2: 16, 1: 32}.get(itemsize, 8)
    lane_align = 128

    # Fold frozen statistics into per-channel scale/bias (only C elements;
    # done once in XLA, not per kernel step).
    scale_c = weight.astype(jnp.float32) * jax.lax.rsqrt(
        running_var.astype(jnp.float32) + jnp.float32(eps))          # (C,)
    bias_c = bias.astype(jnp.float32) - running_mean.astype(jnp.float32) * scale_c

    # Flatten to a 2-D slab: rows = (batch, channel) pairs, lanes = spatial.
    # No padding and no output slicing: boundary blocks are masked by Pallas.
    x2d = x.reshape(NC, HW)
    scale_r = jnp.tile(scale_c, N).reshape(NC, 1)
    bias_r = jnp.tile(bias_c, N).reshape(NC, 1)

    # --- tile selection ---------------------------------------------------
    # Lane tile: big, contiguous, 128-aligned HBM bursts.  Exact divisibility
    # of HW is irrelevant with a cdiv grid.
    if HW <= lane_align:
        bw = HW                                        # equal-full-dim (legal)
    else:
        bw = min(lane_tile_cap, _round_up(HW, lane_align))

    # Row tile: as many rows as keep the live block near target_block_bytes.
    if NC <= row_align:
        br = NC                                        # equal-full-dim (legal)
    else:
        br = max(row_align,
                 (target_block_bytes // (bw * itemsize_eff)) // row_align * row_align)
        br = min(br, _round_up(NC, row_align))

    grid_r = pl.cdiv(NC, br)
    grid_s = pl.cdiv(HW, bw)

    # Megacore (v7x) balance: avoid a 1x1 grid when rows can be split; on
    # v5e/v6e (single TC) this is a no-op cost-wise.
    if grid_r == 1 and grid_s == 1 and NC >= 2 * row_align:
        br = _round_up(pl.cdiv(NC, 2), row_align)
        grid_r = pl.cdiv(NC, br)

    x_spec = pl.BlockSpec((br, bw), lambda i, j: (i, j))
    par_spec = pl.BlockSpec((br, 1), lambda i, j: (i, 0))

    out2d = pl.pallas_call(
        _frozen_bn_kernel,
        out_shape=jax.ShapeDtypeStruct((NC, HW), x.dtype),
        grid_spec=pltpu.PrefetchScalarGridSpec(
            num_scalar_prefetch=0,
            grid=(grid_r, grid_s),
            in_specs=[x_spec, par_spec, par_spec],
            out_specs=x_spec,
        ),
        compiler_params=pltpu.CompilerParams(
            dimension_semantics=("parallel", "parallel"),
            vmem_limit_bytes=48 * 1024 * 1024,
        ),
    )(x2d, scale_r, bias_r)

    # TODO(synk): for a model-level win, fuse this FMA into the producing conv
    # epilogue / following ReLU instead of a standalone memory pass.
    return out2d.reshape(N, C, H, W)


def _reference(x, weight, bias, running_mean, running_var, eps):
    # Pure-JAX mirror of the PyTorch forward (compute in f32).
    C = weight.shape[0]
    w4 = weight.astype(jnp.float32).reshape(1, C, 1, 1)
    b4 = bias.astype(jnp.float32).reshape(1, C, 1, 1)
    rv4 = running_var.astype(jnp.float32).reshape(1, C, 1, 1)
    rm4 = running_mean.astype(jnp.float32).reshape(1, C, 1, 1)
    scale = w4 * jax.lax.rsqrt(rv4 + eps)
    bias4 = b4 - rm4 * scale
    return x.astype(jnp.float32) * scale + bias4


if __name__ == "__main__":
    key = jax.random.PRNGKey(0)
    kx, kw, kb, km, kv, kx2, kx3 = jax.random.split(key, 7)
    eps = 1e-5

    # --- primary test: f32, aligned shapes -------------------------------
    N, C, H, W = 2, 4, 16, 16
    x = jax.random.normal(kx, (N, C, H, W), dtype=jnp.float32)
    weight = 1.0 + 0.1 * jax.random.normal(kw, (C,), dtype=jnp.float32)
    bias = 0.1 * jax.random.normal(kb, (C,), dtype=jnp.float32)
    running_mean = 0.05 * jax.random.normal(km, (C,), dtype=jnp.float32)
    running_var = jnp.abs(1.0 + 0.1 * jax.random.normal(kv, (C,), dtype=jnp.float32))

    out = frozen_batch_norm_2d(x, weight, bias, running_mean, running_var, eps)
    out = jax.block_until_ready(out)
    ref = _reference(x, weight, bias, running_mean, running_var, eps)
    assert out.shape == ref.shape and out.dtype == x.dtype
    assert jnp.allclose(out, ref, atol=1e-5, rtol=1e-5), "f32 mismatch vs reference"

    # --- secondary test: bf16 input, tiny unaligned shapes (full-dim blocks,
    # in-kernel f32 compute / bf16 store) ----------------------------------
    N2, C2, H2, W2 = 2, 3, 5, 7
    x_bf = jax.random.normal(kx2, (N2, C2, H2, W2), dtype=jnp.float32).astype(jnp.bfloat16)
    w2, b2, rm2, rv2 = weight[:C2], bias[:C2], running_mean[:C2], running_var[:C2]
    out_bf = frozen_batch_norm_2d(x_bf, w2, b2, rm2, rv2, eps)
    out_bf = jax.block_until_ready(out_bf)
    assert out_bf.dtype == jnp.bfloat16 and out_bf.shape == (N2, C2, H2, W2)
    ref_bf = _reference(x_bf, w2, b2, rm2, rv2, eps)
    assert jnp.allclose(out_bf.astype(jnp.float32), ref_bf, atol=2e-2, rtol=2e-2), \
        "bf16 mismatch vs reference"

    # --- tertiary test: f32, non-128-multiple spatial dims and multi-step
    # row grid (exercises cdiv partial/masked boundary blocks) -------------
    N3, C3, H3, W3 = 2, 8, 17, 19
    x3 = jax.random.normal(kx3, (N3, C3, H3, W3), dtype=jnp.float32)
    w3 = 1.0 + 0.1 * jax.random.normal(kw, (C3,), dtype=jnp.float32)
    b3 = 0.1 * jax.random.normal(kb, (C3,), dtype=jnp.float32)
    rm3 = 0.05 * jax.random.normal(km, (C3,), dtype=jnp.float32)
    rv3 = jnp.abs(1.0 + 0.1 * jax.random.normal(kv, (C3,), dtype=jnp.float32))
    out3 = frozen_batch_norm_2d(x3, w3, b3, rm3, rv3, eps)
    out3 = jax.block_until_ready(out3)
    ref3 = _reference(x3, w3, b3, rm3, rv3, eps)
    assert out3.shape == ref3.shape and out3.dtype == x3.dtype
    assert jnp.allclose(out3, ref3, atol=1e-5, rtol=1e-5), \
        "f32 unaligned mismatch vs reference"

    print("KERNEL_OK")
</pallas_src>

<mosaic_0001>
module attributes {stable_mosaic.version = 11 : i64} {
  func.func @_frozen_bn_kernel(%arg0: i32, %arg1: i32, %arg2: memref<8x256xf32, #tpu.memory_space<vmem>>, %arg3: memref<8x1xf32, #tpu.memory_space<vmem>>, %arg4: memref<8x1xf32, #tpu.memory_space<vmem>>, %arg5: memref<8x256xf32, #tpu.memory_space<vmem>>) attributes {dimension_semantics = [#tpu.dimension_semantics<parallel>, #tpu.dimension_semantics<parallel>], iteration_bounds = array<i64: 1, 1>, scalar_prefetch = 0 : i64, scratch_operands = 0 : i64, tpu.core_type = #tpu.core_type<tc>, window_params = [{transform_indices = @transform_0, window_bounds = array<i64: 8, 256>}, {transform_indices = @transform_1, window_bounds = array<i64: 8, 1>}, {transform_indices = @transform_2, window_bounds = array<i64: 8, 1>}, {transform_indices = @transform_3, window_bounds = array<i64: 8, 256>}]} {
    %c0 = arith.constant 0 : index
    %c0_0 = arith.constant 0 : index
    %0 = vector.load %arg2[%c0, %c0_0] : memref<8x256xf32, #tpu.memory_space<vmem>>, vector<8x256xf32>
    %c0_1 = arith.constant 0 : index
    %c0_2 = arith.constant 0 : index
    %1 = vector.load %arg3[%c0_1, %c0_2] : memref<8x1xf32, #tpu.memory_space<vmem>>, vector<8x1xf32>
    %2 = vector.broadcast %1 : vector<8x1xf32> to vector<8x256xf32>
    %3 = arith.mulf %0, %2 : vector<8x256xf32>
    %c0_3 = arith.constant 0 : index
    %c0_4 = arith.constant 0 : index
    %4 = vector.load %arg4[%c0_3, %c0_4] : memref<8x1xf32, #tpu.memory_space<vmem>>, vector<8x1xf32>
    %5 = vector.broadcast %4 : vector<8x1xf32> to vector<8x256xf32>
    %6 = arith.addf %3, %5 : vector<8x256xf32>
    %c0_5 = arith.constant 0 : index
    %c0_6 = arith.constant 0 : index
    %7 = vector.load %arg5[%c0_5, %c0_6] : memref<8x256xf32, #tpu.memory_space<vmem>>, vector<8x256xf32>
    tpu.vector_store %arg5[%c0_5, %c0_6], %6 {strides = array<i32>} : memref<8x256xf32, #tpu.memory_space<vmem>>, vector<8x256xf32>,
    return
  }
  func.func @transform_0(%arg0: i32, %arg1: i32) -> (i32, i32) {
    %c0_i32 = arith.constant 0 : i32
    return %arg0, %arg1 : i32, i32
  }
  func.func @transform_1(%arg0: i32, %arg1: i32) -> (i32, i32) {
    %c0_i32 = arith.constant 0 : i32
    %c0_i32_0 = arith.constant 0 : i32
    return %arg0, %c0_i32 : i32, i32
  }
  func.func @transform_2(%arg0: i32, %arg1: i32) -> (i32, i32) {
    %c0_i32 = arith.constant 0 : i32
    %c0_i32_0 = arith.constant 0 : i32
    return %arg0, %c0_i32 : i32, i32
  }
  func.func @transform_3(%arg0: i32, %arg1: i32) -> (i32, i32) {
    %c0_i32 = arith.constant 0 : i32
    return %arg0, %arg1 : i32, i32
  }
}

</mosaic_0001>

<llo_original>
// kernel: tpu_custom_call.1
$region0: #{tpu_custom_call.1}
  #allocation0 [shape = 'u32[]', space=smem, size = 0x4, offset = 0x4, fixed_abs, tag = 'smem constant byte address 0x4 - core index']
  #allocation1 [shape = 'u32[144,128]{1,0:T(1,128)}', space=vmem, size = 0x12000, scoped, tag = 'internal scratch']
  %s0 = inlined_call_operand.vmem [shape: f32[8,256], index: 0, kind: input, shape index: {}]
  %s1 = inlined_call_operand.vmem [shape: f32[8,1], index: 1, kind: input, shape index: {}]
  %s2 = inlined_call_operand.vmem [shape: f32[8,1], index: 2, kind: input, shape index: {}]
  %s3 = inlined_call_operand.hbm [shape: f32[8,256], index: 3, kind: output, shape index: {}]
  %s4 = sld [smem:[#allocation0]]
  $region22: #{tpu_custom_call.1} parent=0
    _
  %s6 = ssub.s32 1, %s4
  %s7 = scalar_select 0, %s6, %s4
  $region1: #{tpu_custom_call.1} parent=0
    #allocation2 [shape = 'u8[8192]{0}', space=vmem, size = 0x2000, scoped, tag = 'output window, operand 0, single buffered']
    #allocation3 [shape = 's32[1]{0}', space=sflag, size = 0x4, scoped, tag = 'scoped memory for tpu_custom_call.1']
    %8 = vsyncpa [#allocation3], 0
    // Predicated region
    $region2: #{tpu_custom_call.1} parent=1 // pred_check
      _
    $region3: #{tpu_custom_call.1} parent=1 // pred_check_branch
      %10 = sbr.rel (0) target = $region5
    $region4: #{tpu_custom_call.1} parent=1 // pred_region
      _
    $region5: #{tpu_custom_call.1} parent=1 // pred_fallthru
      _
    // Predicated region
    $region6: #{tpu_custom_call.1} parent=1 // pred_check
      _
    $region7: #{tpu_custom_call.1} parent=1 // pred_check_branch
      %12 = sbr.rel (0) target = $region9
    $region8: #{tpu_custom_call.1} parent=1 // pred_region
      _
    $region9: #{tpu_custom_call.1} parent=1 // pred_fallthru
      _
    // Predicated region
    $region10: #{tpu_custom_call.1} parent=1 // pred_check
      _
    $region11: #{tpu_custom_call.1} parent=1 // pred_check_branch
      %14 = sbr.rel (0) target = $region13
    $region12: #{tpu_custom_call.1} parent=1 // pred_region
      _
    $region13: #{tpu_custom_call.1} parent=1 // pred_fallthru
      _
    %v15 = vld [vmem:[%s0] sm:$0xff]
    %v16 = vld [vmem:[%s0 + $0x8] sm:$0xff]
    %v17 = vld [vmem:[%s1] sm:$0xff]
    %19 = vset.pattern.permute.xlu0 0
    %20 = vperm.xlu0 %19, %v17
    %v21 = vpop.permute.xlu0 %20
    %v23 = vmul.f32 %v15, %v21
    %v24 = vmul.f32 %v16, %v21
    %v25 = vld [vmem:[%s2] sm:$0xff]
    %27 = vset.pattern.permute.xlu0 0
    %28 = vperm.xlu0 %27, %v25
    %v29 = vpop.permute.xlu0 %28
    %v31 = vadd.f32 %v23, %v29
    %v32 = vadd.f32 %v24, %v29
    %33 = vst [vmem:[#allocation2] sm:$0xff] %v31
    %34 = vst [vmem:[#allocation2 + $0x8] sm:$0xff] %v32
    // Predicated region
    $region14: #{tpu_custom_call.1} parent=1 // pred_check
      _
    $region15: #{tpu_custom_call.1} parent=1 // pred_check_branch
      %36 = sbr.rel (0) target = $region17
    $region16: #{tpu_custom_call.1} parent=1 // pred_region
      %s38 = ssub.s32 256, 256
      %39 = vsyncadd [#allocation3], %s38
      %s41 = sshll.u32 [#allocation2], 4
      %s42 = int_to_ptr.vmem [resolvable:$true] %s41
      %44 = dma.vmem_to_hbm [thread:$0]  %s42, 256, %s3, [#allocation3]
    $region17: #{tpu_custom_call.1} parent=1 // pred_fallthru
      _
    // Predicated region
    $region18: #{tpu_custom_call.1} parent=1 // pred_check
      _
    $region19: #{tpu_custom_call.1} parent=1 // pred_check_branch
      %46 = sbr.rel (0) target = $region21
    $region20: #{tpu_custom_call.1} parent=1 // pred_region
      %47 = dma.done [#allocation3], 256
    $region21: #{tpu_custom_call.1} parent=1 // pred_fallthru
      _
    %48 = vsyncpa [#allocation3], 1

</llo_original>
